<compile_context>
chip_gen: v7x
topology: tpu7x:2x2x1
jax: 0.10.0
libtpu: 0.0.40
codegen_flags: <defaults>
</compile_context>

<pallas_src>
import math
from functools import partial

import numpy as np
import jax
import jax.numpy as jnp
from jax.experimental import pallas as pl
from jax.experimental.pallas import tpu as pltpu


def _round_up(x, m):
    return ((x + m - 1) // m) * m


# ----------------------------------------------------------------------------
# Pallas kernel: one MXU dot per (group, M-tile)
#   xs_ref : (TM, K)      bf16   sampled input rows (K = KW*KH*Cg)
#   wt_ref : (K, O_pad)   bf16   whole per-group weight (VMEM resident)
#   b_ref  : (1, O_pad)   f32
#   o_ref  : (TM, O_pad)  f32    written once, bias fused
# ----------------------------------------------------------------------------
def _conv_gemm_kernel(xs_ref, wt_ref, b_ref, o_ref):
    o_ref[...] = (jnp.dot(xs_ref[...], wt_ref[...],
                          preferred_element_type=jnp.float32)
                  + b_ref[...]).astype(o_ref.dtype)


def _vmem_capacity_bytes():
    try:
        info = pltpu.get_tpu_info()
        cap = getattr(info, "vmem_capacity_bytes", None)
        if cap:
            return int(cap)
    except Exception:
        pass
    return None


def _pick_tile_and_vmem(M, K, O_pad, in_bytes):
    """Generation-aware M tile + vmem limit.  ≥2 M tiles for v7x megacore."""
    cap = _vmem_capacity_bytes()
    if cap is None or cap <= 80 * 1024 * 1024:      # v7x class (64 MiB / TC) or unknown
        budget = 44 * 1024 * 1024
        limit_cap = 48 * 1024 * 1024
    else:                                           # v5e / v6e (128 MiB)
        budget = 96 * 1024 * 1024
        limit_cap = 110 * 1024 * 1024

    def need(tm):
        return (2 * tm * K * in_bytes           # xs tile, double-buffered
                + 2 * K * O_pad * in_bytes      # resident weight (conservative ×2)
                + 2 * O_pad * 4                 # bias
                + 2 * tm * O_pad * 4)           # output tile, double-buffered

    tm = min(2048, _round_up(M, 8))
    while need(tm) > budget and tm > 8:
        tm = max(8, ((tm // 2) // 8) * 8)

    # guarantee >= 2 iterations on the parallel M axis (v7x has 2 TensorCores)
    if tm >= M and M > 8:
        tm = _round_up((M + 1) // 2, 8)

    vmem_limit = int(min(limit_cap, max(32 * 1024 * 1024, need(tm) + (8 << 20))))
    return tm, vmem_limit


def _conv_gemm(xs, wt, bias3d):
    """xs: (G, M, K) bf16, wt: (G, K, O_pad) bf16, bias3d: (G, 1, O_pad) f32
       -> (G, M, O_pad) f32."""
    G, M, K = xs.shape
    O_pad = wt.shape[2]
    TM, vmem_limit = _pick_tile_and_vmem(M, K, O_pad, xs.dtype.itemsize)

    # NOTE: if M % TM != 0 the last xs block contains rows past M; they only feed
    # output rows that Pallas masks on store, so the result is unaffected.
    return pl.pallas_call(
        _conv_gemm_kernel,
        out_shape=jax.ShapeDtypeStruct((G, M, O_pad), jnp.float32),
        grid=(G, pl.cdiv(M, TM)),
        in_specs=[
            pl.BlockSpec((None, TM, K), lambda g, m: (g, m, 0)),
            pl.BlockSpec((None, K, O_pad), lambda g, m: (g, 0, 0)),   # resident / group
            pl.BlockSpec((None, 1, O_pad), lambda g, m: (g, 0, 0)),
        ],
        out_specs=pl.BlockSpec((None, TM, O_pad), lambda g, m: (g, m, 0)),
        compiler_params=pltpu.CompilerParams(
            dimension_semantics=("parallel", "parallel"),
            vmem_limit_bytes=vmem_limit),
    )(xs, wt, bias3d)


# ----------------------------------------------------------------------------
# Static fractional-stride separable bilinear sampling (zero outside)
# ----------------------------------------------------------------------------
def _bilinear_taps(out_size, ksize, stride, pad, dil, in_size):
    """Static bilinear taps, output-major ordering: flattened index = o*ksize + k."""
    pos = (np.arange(out_size, dtype=np.float64)[:, None] * float(stride)
           + np.arange(ksize, dtype=np.float64)[None, :] * dil - pad)   # (out, k)
    p0 = np.floor(pos).astype(np.int64)
    frac = pos - p0
    p1 = p0 + 1
    w0 = ((1.0 - frac) * ((p0 >= 0) & (p0 < in_size))).astype(np.float32)
    w1 = (frac * ((p1 >= 0) & (p1 < in_size))).astype(np.float32)
    return (np.clip(p0, 0, in_size - 1).astype(np.int32).ravel(), w0.ravel(),
            np.clip(p1, 0, in_size - 1).astype(np.int32).ravel(), w1.ravel())


def _sample_taps_grouped(xg, KH, KW, stride_h, stride_w, pad_h, pad_w,
                         dil_h, dil_w, OH, OW, out_dtype):
    """xg: (G, N, Cg, H, W) -> xs: (G, N*OH*OW, KW*KH*Cg) in out_dtype.

    M is ordered (n, oh, ow) (cheap NHWC->NCHW output permute) and K is ordered
    (kw, kh, cg) so the fully tap-expanded tensor is written exactly once in its
    final (G, M, K) layout; only the raw input and a KH-expanded intermediate are
    ever transposed.
    """
    G, N, Cg, H, W = xg.shape
    h0, wh0, h1, wh1 = _bilinear_taps(OH, KH, stride_h, pad_h, dil_h, H)  # (OH*KH,)
    w0, ww0, w1, ww1 = _bilinear_taps(OW, KW, stride_w, pad_w, dil_w, W)  # (OW*KW,)

    x0 = jnp.transpose(xg, (0, 1, 3, 4, 2))                     # (G, N, H, W, Cg)

    # bilinear blend along H -> (G, N, OH, KH, W, Cg); then swap KH<->W so the W
    # gather lands (OW, KW) directly in front of KH (no transpose of the full
    # tap expansion).
    xh = (jnp.take(x0, jnp.asarray(h0), axis=2)
          * jnp.asarray(wh0)[None, None, :, None, None]
          + jnp.take(x0, jnp.asarray(h1), axis=2)
          * jnp.asarray(wh1)[None, None, :, None, None])
    xh = xh.reshape(G, N, OH, KH, W, Cg).transpose(0, 1, 2, 4, 3, 5)   # (G,N,OH,W,KH,Cg)

    # bilinear blend along W -> (G, N, OH, OW, KW, KH, Cg); memory order already
    # matches the final (G, M, K) view, so the reshape below is free.
    xs = (jnp.take(xh, jnp.asarray(w0), axis=3)
          * jnp.asarray(ww0)[None, None, None, :, None, None]
          + jnp.take(xh, jnp.asarray(w1), axis=3)
          * jnp.asarray(ww1)[None, None, None, :, None, None])
    return xs.reshape(G, N * OH * OW, KW * KH * Cg).astype(out_dtype)


# ----------------------------------------------------------------------------
# Forward (jitted; strides / hyper-params are static)
# ----------------------------------------------------------------------------
@partial(jax.jit, static_argnames=("kernel_size", "padding", "dilation", "groups",
                                   "stride_h", "stride_w", "compute_dtype"))
def _conv2d_stride2_forward(x, weight, bias, *, kernel_size, padding, dilation,
                            groups, stride_h, stride_w, compute_dtype):
    KH, KW = kernel_size
    pad_h, pad_w = padding
    dil_h, dil_w = dilation

    # "input smaller than kernel" padding path of the torch module
    N, C_in, H, W = x.shape
    input_pad = H < KH or W < KW
    extra_h = max(KH - H, 0)
    extra_w = max(KW - W, 0)
    if input_pad:
        x = jnp.pad(x, ((0, 0), (0, 0), (0, extra_h), (0, extra_w)))
        N, C_in, H, W = x.shape

    sh_int = int(np.floor(stride_h))
    sw_int = int(np.floor(stride_w))
    OH = (H + 2 * pad_h - (dil_h * (KH - 1) + 1)) // sh_int + 1
    OW = (W + 2 * pad_w - (dil_w * (KW - 1) + 1)) // sw_int + 1
    if OH <= 0 or OW <= 0:
        raise ValueError("convolution input is too small")

    G = groups
    O = weight.shape[0]
    Cg = C_in // G
    Og = O // G
    O_pad = _round_up(Og, 128)            # lane-dense output stores

    # group axis to the front of the raw input (cheap, input-sized)
    xg = x.reshape(N, G, Cg, H, W).transpose(1, 0, 2, 3, 4)     # (G, N, Cg, H, W)
    xs = _sample_taps_grouped(xg, KH, KW, stride_h, stride_w, pad_h, pad_w,
                              dil_h, dil_w, OH, OW, compute_dtype)   # (G, M, K)

    # weights packed to match K ordering (kw, kh, cg); bias broadcast row
    wt = (weight.reshape(G, Og, Cg, KH, KW)
                 .transpose(0, 4, 3, 2, 1)
                 .reshape(G, KW * KH * Cg, Og))
    wt = jnp.pad(wt, ((0, 0), (0, 0), (0, O_pad - Og))).astype(compute_dtype)
    b3 = jnp.pad(bias.reshape(G, Og), ((0, 0), (0, O_pad - Og))) \
            .reshape(G, 1, O_pad).astype(jnp.float32)

    out3d = _conv_gemm(xs, wt, b3)                               # (G, M, O_pad) f32
    out = out3d[:, :, :Og].reshape(G, N, OH, OW, Og)
    out = out.transpose(1, 0, 4, 2, 3).reshape(N, O, OH, OW)     # NCHW

    if input_pad:
        out = out[:, :, :OH - extra_h, :OW - extra_w]
    return out


# ----------------------------------------------------------------------------
# Module
# ----------------------------------------------------------------------------
class Conv2dStride2:
    """JAX/Pallas port of the PyTorch Conv2dStride2 module (NCHW layout)."""

    def __init__(self, in_channels, out_channels, kernel_size,
                 padding=0, dilation=1, groups=1, bias=True, key=None,
                 compute_dtype=jnp.bfloat16):
        def _pair(v):
            return (v, v) if isinstance(v, int) else tuple(v)
        assert in_channels % groups == 0 and out_channels % groups == 0
        self.in_channels = in_channels
        self.out_channels = out_channels
        self.kernel_size = _pair(kernel_size)
        self.padding = _pair(padding)
        self.dilation = _pair(dilation)
        self.groups = groups
        self.use_bias = bias
        self.compute_dtype = compute_dtype
        self.stride = (2.0, 2.0)                 # torch: ones(2) + 1.0, frozen

        key = jax.random.PRNGKey(0) if key is None else key
        kw_, kb_ = jax.random.split(key)
        kh, kwid = self.kernel_size
        # reset_parameters(): weight ~ U(-stdv, stdv), stdv = 1/sqrt(in_ch*KH*KW)
        stdv = 1.0 / math.sqrt(in_channels * kh * kwid)
        self.weight = jax.random.uniform(
            kw_, (out_channels, in_channels // groups, kh, kwid),
            minval=-stdv, maxval=stdv, dtype=jnp.float32)
        if bias:
            fan_in = (in_channels // groups) * kh * kwid
            bound = 1.0 / math.sqrt(fan_in)
            self.bias = jax.random.uniform(
                kb_, (out_channels,), minval=-bound, maxval=bound,
                dtype=jnp.float32)
        else:
            self.bias = jnp.zeros((out_channels,), jnp.float32)

    def __call__(self, x, stride_h=None, stride_w=None):
        stride_h = self.stride[0] if stride_h is None else float(stride_h)
        stride_w = self.stride[1] if stride_w is None else float(stride_w)
        return _conv2d_stride2_forward(
            x, self.weight, self.bias,
            kernel_size=self.kernel_size, padding=self.padding,
            dilation=self.dilation, groups=self.groups,
            stride_h=stride_h, stride_w=stride_w,
            compute_dtype=self.compute_dtype)


# ----------------------------------------------------------------------------
if __name__ == "__main__":
    key = jax.random.PRNGKey(0)
    kx, km = jax.random.split(key)

    N, C, H, W = 2, 4, 16, 16
    O, K = 8, 3
    x = jax.random.normal(kx, (N, C, H, W), dtype=jnp.float32)

    conv = Conv2dStride2(C, O, K, padding=1, dilation=1, groups=1,
                         bias=True, key=km)

    # --- integer-stride sanity check (module default stride = (2.0, 2.0)) ----
    out_int = jax.block_until_ready(conv(x))
    # kernel uses bf16 MXU operands with f32 accumulation -> compare against a
    # reference fed the same bf16-rounded operands.
    xq = x.astype(jnp.bfloat16).astype(jnp.float32)
    wq = conv.weight.astype(jnp.bfloat16).astype(jnp.float32)
    ref = jax.lax.conv_general_dilated(
        xq, wq, window_strides=(2, 2), padding=((1, 1), (1, 1)),
        dimension_numbers=("NCHW", "OIHW", "NCHW"),
        preferred_element_type=jnp.float32)
    ref = ref + conv.bias[None, :, None, None]
    assert out_int.shape == ref.shape, (out_int.shape, ref.shape)
    assert np.allclose(np.asarray(out_int), np.asarray(ref),
                       atol=5e-3, rtol=5e-3), \
        "integer-stride path mismatch vs lax.conv"

    # --- fractional strides (the point of the module) -------------------------
    out = jax.block_until_ready(conv(x, 1.5, 2.0))
    expected_shape = (N, O, (H + 2 - 3) // 1 + 1, (W + 2 - 3) // 2 + 1)
    assert out.shape == expected_shape, (out.shape, expected_shape)
    assert np.isfinite(np.asarray(out)).all()

    print("KERNEL_OK")
</pallas_src>

<mosaic_0001>
module attributes {stable_mosaic.version = 11 : i64} {
  func.func @_conv_gemm_kernel(%arg0: i32, %arg1: i32, %arg2: memref<1x64x36xbf16, #tpu.memory_space<vmem>>, %arg3: memref<1x36x128xbf16, #tpu.memory_space<vmem>>, %arg4: memref<1x1x128xf32, #tpu.memory_space<vmem>>, %arg5: memref<1x64x128xf32, #tpu.memory_space<vmem>>) attributes {dimension_semantics = [#tpu.dimension_semantics<parallel>, #tpu.dimension_semantics<parallel>], iteration_bounds = array<i64: 1, 2>, scalar_prefetch = 0 : i64, scratch_operands = 0 : i64, tpu.core_type = #tpu.core_type<tc>, window_params = [{transform_indices = @transform_0, window_bounds = array<i64: 1, 64, 36>}, {transform_indices = @transform_1, window_bounds = array<i64: 1, 36, 128>}, {transform_indices = @transform_2, window_bounds = array<i64: 1, 1, 128>}, {transform_indices = @transform_3, window_bounds = array<i64: 1, 64, 128>}]} {
    %c0 = arith.constant 0 : index
    %c0_0 = arith.constant 0 : index
    %c0_1 = arith.constant 0 : index
    %0 = vector.load %arg2[%c0, %c0_0, %c0_1] : memref<1x64x36xbf16, #tpu.memory_space<vmem>>, vector<1x64x36xbf16>
    %1 = vector.shape_cast %0 : vector<1x64x36xbf16> to vector<64x36xbf16>
    %c0_2 = arith.constant 0 : index
    %c0_3 = arith.constant 0 : index
    %c0_4 = arith.constant 0 : index
    %2 = vector.load %arg3[%c0_2, %c0_3, %c0_4] : memref<1x36x128xbf16, #tpu.memory_space<vmem>>, vector<1x36x128xbf16>
    %3 = vector.shape_cast %2 : vector<1x36x128xbf16> to vector<36x128xbf16>
    %cst = arith.constant dense<0.000000e+00> : vector<64x128xf32>
    %4 = tpu.matmul %1, %3, %cst {dimension_numbers = #tpu.dot_dimension_numbers<[1], [0], [0], [1], [0, 0, 1, 1], [], []>} : vector<64x36xbf16>, vector<36x128xbf16>, vector<64x128xf32> -> vector<64x128xf32>
    %c0_5 = arith.constant 0 : index
    %c0_6 = arith.constant 0 : index
    %c0_7 = arith.constant 0 : index
    %5 = vector.load %arg4[%c0_5, %c0_6, %c0_7] : memref<1x1x128xf32, #tpu.memory_space<vmem>>, vector<1x1x128xf32>
    %6 = vector.shape_cast %5 : vector<1x1x128xf32> to vector<1x128xf32>
    %7 = vector.broadcast %6 : vector<1x128xf32> to vector<64x128xf32>
    %8 = arith.addf %4, %7 : vector<64x128xf32>
    %c0_8 = arith.constant 0 : index
    %c0_9 = arith.constant 0 : index
    %c0_10 = arith.constant 0 : index
    %9 = vector.load %arg5[%c0_8, %c0_9, %c0_10] : memref<1x64x128xf32, #tpu.memory_space<vmem>>, vector<1x64x128xf32>
    %10 = vector.shape_cast %9 : vector<1x64x128xf32> to vector<64x128xf32>
    %11 = vector.shape_cast %8 : vector<64x128xf32> to vector<1x64x128xf32>
    tpu.vector_store %arg5[%c0_8, %c0_9, %c0_10], %11 {strides = array<i32>} : memref<1x64x128xf32, #tpu.memory_space<vmem>>, vector<1x64x128xf32>,
    return
  }
  func.func @transform_0(%arg0: i32, %arg1: i32) -> (i32, i32, i32) {
    %c0_i32 = arith.constant 0 : i32
    %c0_i32_0 = arith.constant 0 : i32
    return %arg0, %arg1, %c0_i32 : i32, i32, i32
  }
  func.func @transform_1(%arg0: i32, %arg1: i32) -> (i32, i32, i32) {
    %c0_i32 = arith.constant 0 : i32
    %c0_i32_0 = arith.constant 0 : i32
    %c0_i32_1 = arith.constant 0 : i32
    return %arg0, %c0_i32, %c0_i32_0 : i32, i32, i32
  }
  func.func @transform_2(%arg0: i32, %arg1: i32) -> (i32, i32, i32) {
    %c0_i32 = arith.constant 0 : i32
    %c0_i32_0 = arith.constant 0 : i32
    %c0_i32_1 = arith.constant 0 : i32
    return %arg0, %c0_i32, %c0_i32_0 : i32, i32, i32
  }
  func.func @transform_3(%arg0: i32, %arg1: i32) -> (i32, i32, i32) {
    %c0_i32 = arith.constant 0 : i32
    %c0_i32_0 = arith.constant 0 : i32
    return %arg0, %arg1, %c0_i32 : i32, i32, i32
  }
}

</mosaic_0001>

<llo_original>
// kernel: _conv2d_stride2_forward.1
$region0: #{_conv2d_stride2_forward.1}
  #allocation0 [shape = 'u32[]', space=smem, size = 0x4, offset = 0x4, fixed_abs, tag = 'smem constant byte address 0x4 - core index']
  #allocation1 [shape = 'u32[144,128]{1,0:T(1,128)}', space=vmem, size = 0x12000, scoped, tag = 'internal scratch']
  %s0 = inlined_call_operand.vmem [shape: bf16[1,128,36], index: 0, kind: input, shape index: {}]
  %s1 = inlined_call_operand.vmem [shape: bf16[1,36,128], index: 1, kind: input, shape index: {}]
  %s2 = inlined_call_operand.vmem [shape: f32[1,1,128], index: 2, kind: input, shape index: {}]
  %s3 = inlined_call_operand.vmem [shape: f32[1,128,128], index: 3, kind: output, shape index: {}]
  %s4 = sld [smem:[#allocation0]]
  $region45: #{_conv2d_stride2_forward.1} parent=0
    _
  %s6 = ssub.s32 1, %s4
  %s7 = scalar_select 0, %s6, %s4
  loop: start=0, step=1, limit=4
  $region2: #{_conv2d_stride2_forward.1} parent=0 // loop_pre_header
    _
  $region3: #{_conv2d_stride2_forward.1} parent=0 // loop_header
    %s9 = sphi 0, %s13
    %p10 = scmp.ge.s32.totalorder %s9, 4
    %s16 = sphi 0, %s28
    %s17 = sphi 0, %s24
    %s18 = sphi 0, %s16
    %s19 = sphi 0, %s17
    %s20 = sphi 0, %s18
    %s21 = sphi 0, %s19
    %s33 = sphi 0, %s35
    %s36 = sphi 0, %s33
    %s37 = sphi 0, %s36
    %s53 = sphi 0, %s37
    %s59 = sphi 0, %s61
    %s62 = sphi 0, %s59
    %s63 = sphi 0, %s62
    %s79 = sphi 0, %s63
    %s85 = sphi 0, %s87
    %s88 = sphi 0, %s85
    %s89 = sphi 0, %s88
    %s105 = sphi 0, %s89
    %s113 = sphi 0, %s115
    %s116 = sphi 0, %s113
    %s117 = sphi 0, %s116
    %s133 = sphi 0, %s117
  $region4: #{_conv2d_stride2_forward.1} parent=0 // loop_header_branch
    %12 = sbr.rel (%p10) target = $region8
  $region5: #{_conv2d_stride2_forward.1} parent=0 // loop_body
    %s14 = ssub.s32 %s9, 1
    %s15 = ssub.s32 %s9, 2
    %s22 = sadd.s32 1, %s17
    %p23 = scmp.ge.s32.totalorder %s22, 2
    %s24 = scalar_select %p23, 0, %s22
    %s25 = sadd.s32 1, %s16
    %s26 = scalar_select %p23, %s25, %s16
    %p27 = scmp.ge.s32.totalorder %s26, 1
    %s28 = scalar_select %p27, 0, %s26
    %s29 = ssub.s32 %s16, %s28
    %s30 = ssub.s32 %s17, %s24
    %s31 = sor.u32 %s29, %s30
    %p32 = scmp.eq.s32.totalorder %s31, 0
    %s34 = sadd.s32 %s33, 1
    %s35 = scalar_select %p32, %s33, %s34
    %p38 = pneg %p32
    %p39 = scmp.eq.s32.totalorder %s9, 1
    %p40 = por %p38, %p39
    %p41 = scmp.ne.s32.totalorder %s33, %s36
    %p42 = scmp.eq.s32.totalorder %s9, 0
    %p43 = por %p41, %p42
    %p44 = scmp.ne.s32.totalorder %s33, %s36
    %p45 = scmp.eq.s32.totalorder %s14, 1
    %p46 = por %p44, %p45
    %p47 = scmp.ne.s32.totalorder %s36, %s37
    %p48 = scmp.eq.s32.totalorder %s14, 0
    %p49 = por %p47, %p48
    %p50 = scmp.ne.s32.totalorder %s36, %s37
    %p51 = scmp.eq.s32.totalorder %s15, 1
    %p52 = por %p50, %p51
    %p54 = scmp.ne.s32.totalorder %s37, %s53
    %p55 = scmp.eq.s32.totalorder %s15, 0
    %p56 = por %p54, %p55
    %s57 = ssub.s32 %s16, %s28
    %p58 = scmp.eq.s32.totalorder %s57, 0
    %s60 = sadd.s32 %s59, 1
    %s61 = scalar_select %p58, %s59, %s60
    %p64 = pneg %p58
    %p65 = scmp.eq.s32.totalorder %s9, 1
    %p66 = por %p64, %p65
    %p67 = scmp.ne.s32.totalorder %s59, %s62
    %p68 = scmp.eq.s32.totalorder %s9, 0
    %p69 = por %p67, %p68
    %p70 = scmp.ne.s32.totalorder %s59, %s62
    %p71 = scmp.eq.s32.totalorder %s14, 1
    %p72 = por %p70, %p71
    %p73 = scmp.ne.s32.totalorder %s62, %s63
    %p74 = scmp.eq.s32.totalorder %s14, 0
    %p75 = por %p73, %p74
    %p76 = scmp.ne.s32.totalorder %s62, %s63
    %p77 = scmp.eq.s32.totalorder %s15, 1
    %p78 = por %p76, %p77
    %p80 = scmp.ne.s32.totalorder %s63, %s79
    %p81 = scmp.eq.s32.totalorder %s15, 0
    %p82 = por %p80, %p81
    %s83 = ssub.s32 %s16, %s28
    %p84 = scmp.eq.s32.totalorder %s83, 0
    %s86 = sadd.s32 %s85, 1
    %s87 = scalar_select %p84, %s85, %s86
    %p90 = pneg %p84
    %p91 = scmp.eq.s32.totalorder %s9, 1
    %p92 = por %p90, %p91
    %p93 = scmp.ne.s32.totalorder %s85, %s88
    %p94 = scmp.eq.s32.totalorder %s9, 0
    %p95 = por %p93, %p94
    %p96 = scmp.ne.s32.totalorder %s85, %s88
    %p97 = scmp.eq.s32.totalorder %s14, 1
    %p98 = por %p96, %p97
    %p99 = scmp.ne.s32.totalorder %s88, %s89
    %p100 = scmp.eq.s32.totalorder %s14, 0
    %p101 = por %p99, %p100
    %p102 = scmp.ne.s32.totalorder %s88, %s89
    %p103 = scmp.eq.s32.totalorder %s15, 1
    %p104 = por %p102, %p103
    %p106 = scmp.ne.s32.totalorder %s89, %s105
    %p107 = scmp.eq.s32.totalorder %s15, 0
    %p108 = por %p106, %p107
    %s109 = ssub.s32 %s16, %s28
    %s110 = ssub.s32 %s17, %s24
    %s111 = sor.u32 %s109, %s110
    %p112 = scmp.eq.s32.totalorder %s111, 0
    %s114 = sadd.s32 %s113, 1
    %s115 = scalar_select %p112, %s113, %s114
    %p118 = pneg %p112
    %p119 = scmp.eq.s32.totalorder %s9, 1
    %p120 = por %p118, %p119
    %p121 = scmp.ne.s32.totalorder %s113, %s116
    %p122 = scmp.eq.s32.totalorder %s9, 0
    %p123 = por %p121, %p122
    %p124 = scmp.ne.s32.totalorder %s113, %s116
    %p125 = scmp.eq.s32.totalorder %s14, 1
    %p126 = por %p124, %p125
    %p127 = scmp.ne.s32.totalorder %s116, %s117
    %p128 = scmp.eq.s32.totalorder %s14, 0
    %p129 = por %p127, %p128
    %p130 = scmp.ne.s32.totalorder %s116, %s117
    %p131 = scmp.eq.s32.totalorder %s15, 1
    %p132 = por %p130, %p131
    %p134 = scmp.ne.s32.totalorder %s117, %s133
    %p135 = scmp.eq.s32.totalorder %s15, 0
    %p136 = por %p134, %p135
    %p137 = scmp.le.s32.totalorder 1, %s9
    %p138 = scmp.lt.s32.totalorder %s9, 3
    %p139 = pnand %p137, %p138
    %p140 = pneg %p139
    // Predicated region
    $region9: #{_conv2d_stride2_forward.1} parent=5 // pred_check
      _
    $region10: #{_conv2d_stride2_forward.1} parent=5 // pred_check_branch
      %142 = sbr.rel (%p139) target = $region12
    $region11: #{_conv2d_stride2_forward.1} parent=5 // pred_region
      %s143 = ssub.s32 %s9, 1
      // Predicated region
      $region13: #{_conv2d_stride2_forward.1} parent=11 // pred_check
        %p144 = pneg %p75
      $region14: #{_conv2d_stride2_forward.1} parent=11 // pred_check_branch
        %146 = sbr.rel (%p144) target = $region16
      $region15: #{_conv2d_stride2_forward.1} parent=11 // pred_region
        %p147 = scmp.lt.s32.totalorder %s18, 0
        %s148 = scalar_select %p147, %s18, 0
        %s149 = smul.addr %s148, 5
        %s150 = smul.addr %s149, 4
        %s151 = scalar_lea.vmem %s1, %s150
      $region16: #{_conv2d_stride2_forward.1} parent=11 // pred_fallthru
        _
      // Predicated region
      $region17: #{_conv2d_stride2_forward.1} parent=11 // pred_check
        %p152 = pneg %p101
      $region18: #{_conv2d_stride2_forward.1} parent=11 // pred_check_branch
        %154 = sbr.rel (%p152) target = $region20
      $region19: #{_conv2d_stride2_forward.1} parent=11 // pred_region
        %p155 = scmp.lt.s32.totalorder %s18, 0
        %s156 = scalar_select %p155, %s18, 0
        %s157 = scalar_lea.vmem %s2, %s156
      $region20: #{_conv2d_stride2_forward.1} parent=11 // pred_fallthru
        _
    $region12: #{_conv2d_stride2_forward.1} parent=5 // pred_fallthru
      _
    %p158 = scmp.lt.s32.totalorder %s9, 2
    // Predicated region
    $region21: #{_conv2d_stride2_forward.1} parent=5 // pred_check
      %p159 = pneg %p158
    $region22: #{_conv2d_stride2_forward.1} parent=5 // pred_check_branch
      %161 = sbr.rel (%p159) target = $region24
    $region23: #{_conv2d_stride2_forward.1} parent=5 // pred_region
      // Predicated region
      $region25: #{_conv2d_stride2_forward.1} parent=23 // pred_check
        %p162 = pneg %p43
      $region26: #{_conv2d_stride2_forward.1} parent=23 // pred_check_branch
        %164 = sbr.rel (%p162) target = $region28
      $region27: #{_conv2d_stride2_forward.1} parent=23 // pred_region
        %s165 = smul.u32 8, %s17
        %p166 = scmp.lt.s32.totalorder %s16, 0
        %s167 = scalar_select %p166, %s16, 0
        %p168 = scmp.lt.s32.totalorder %s165, 15
        %s169 = scalar_select %p168, %s165, 15
        %s170 = smul.addr %s167, 16
        %s171 = sadd.s32 %s169, %s170
        %s172 = smul.addr %s171, 4
        %s173 = scalar_lea.vmem %s0, %s172
        %s174 = smul.u32 8, %s17
      $region28: #{_conv2d_stride2_forward.1} parent=23 // pred_fallthru
        _
    $region24: #{_conv2d_stride2_forward.1} parent=5 // pred_fallthru
      _
    %p175 = scmp.le.s32.totalorder 1, %s9
    %p176 = scmp.lt.s32.totalorder %s9, 3
    %p177 = pnand %p175, %p176
    %p178 = pneg %p177
    // Predicated region
    $region29: #{_conv2d_stride2_forward.1} parent=5 // pred_check
      _
    $region30: #{_conv2d_stride2_forward.1} parent=5 // pred_check_branch
      %180 = sbr.rel (%p177) target = $region32
    $region31: #{_conv2d_stride2_forward.1} parent=5 // pred_region
      %s181 = ssub.s32 %s9, 1
      %s182 = smul.u32 8, %s19
      %p183 = scmp.lt.s32.totalorder %s18, 0
      %s184 = scalar_select %p183, %s18, 0
      %p185 = scmp.lt.s32.totalorder %s182, 15
      %s186 = scalar_select %p185, %s182, 15
      %s187 = smul.addr %s184, 16
      %s188 = sadd.s32 %s186, %s187
      %s189 = smul.addr %s188, 4
      %s190 = scalar_lea.vmem %s0, %s189
      %p191 = pneg %p49
      %p192 = pneg %p46
      %p193 = scmp.lt.s32.totalorder %s18, 0
      %s194 = scalar_select %p193, %s18, 0
      %s195 = smul.addr %s194, 5
      %s196 = smul.addr %s195, 4
      %s197 = scalar_lea.vmem %s1, %s196
      %p198 = pneg %p75
      %p199 = pneg %p72
      %p200 = scmp.lt.s32.totalorder %s18, 0
      %s201 = scalar_select %p200, %s18, 0
      %s202 = scalar_lea.vmem %s2, %s201
      %p203 = pneg %p101
      %p204 = pneg %p98
      %p205 = pneg %p129
      %p206 = pneg %p126
      %s207 = smul.u32 8, %s19
      %p208 = scmp.lt.s32.totalorder %s18, 0
      %s209 = scalar_select %p208, %s18, 0
      %p210 = scmp.lt.s32.totalorder %s207, 15
      %s211 = scalar_select %p210, %s207, 15
      %s212 = smul.addr %s209, 16
      %s213 = sadd.s32 %s211, %s212
      %s214 = smul.addr %s213, 8
      %s215 = scalar_lea.vmem %s3, %s214
      %s216 = smul.u32 8, %s19
      %p217 = scmp.lt.s32.totalorder %s18, 0
      %s218 = scalar_select %p217, %s18, 0
      %p219 = scmp.lt.s32.totalorder %s216, 15
      %s220 = scalar_select %p219, %s216, 15
      %s221 = smul.addr %s218, 16
      %s222 = sadd.s32 %s220, %s221
      %s223 = smul.addr %s222, 4
      %s224 = scalar_lea.vmem %s0, %s223
      %s225 = smul.u32 8, %s19
      %p226 = scmp.lt.s32.totalorder %s18, 0
      %s227 = scalar_select %p226, %s18, 0
      %s228 = smul.addr %s227, 5
      %s229 = smul.addr %s228, 4
      %s230 = scalar_lea.vmem %s1, %s229
      %p231 = scmp.lt.s32.totalorder %s18, 0
      %s232 = scalar_select %p231, %s18, 0
      %s233 = scalar_lea.vmem %s2, %s232
      %s234 = smul.u32 8, %s19
      %p235 = scmp.lt.s32.totalorder %s18, 0
      %s236 = scalar_select %p235, %s18, 0
      %p237 = scmp.lt.s32.totalorder %s234, 15
      %s238 = scalar_select %p237, %s234, 15
      %s239 = smul.addr %s236, 16
      %s240 = sadd.s32 %s238, %s239
      %s241 = smul.addr %s240, 8
      %s242 = scalar_lea.vmem %s3, %s241
      %s243 = smul.u32 8, %s19
      %v245 = vld [vmem:[%s224] sm:$0xf]
      %v246 = vld [vmem:[%s224 + $0x4] sm:$0xf]
      %v247 = vld [vmem:[%s224 + $0x8] sm:$0xf]
      %v248 = vld [vmem:[%s224 + $0xc] sm:$0xf]
      %v249 = vld [vmem:[%s224 + $0x10] sm:$0xf]
      %v250 = vld [vmem:[%s224 + $0x14] sm:$0xf]
      %v251 = vld [vmem:[%s224 + $0x18] sm:$0xf]
      %v252 = vld [vmem:[%s224 + $0x1c] sm:$0xf]
      %v253 = vld [vmem:[%s230] sm:$0xf]
      %v254 = vld [vmem:[%s230 + $0x4] sm:$0xf]
      %v255 = vld [vmem:[%s230 + $0x8] sm:$0xf]
      %v256 = vld [vmem:[%s230 + $0xc] sm:$0xf]
      %v257 = vld [vmem:[%s230 + $0x10] sm:$0x3]
      %v258 = vld [vmem:[%s233] sm:$0x1]
      %v260 = vlaneseq
      %v261 = vshrl.u32 %v260, 7
      %v262 = vsub.s32 0, %v261
      %v263 = vrot.slane %v258, %v262
      %v273 = vunpack.c.l.b16 %v245
      %v274 = vunpack.c.l.b16 %v246
      %v275 = vunpack.c.l.b16 %v247
      %v276 = vunpack.c.l.b16 %v248
      %v277 = vunpack.c.l.b16 %v249
      %v278 = vunpack.c.l.b16 %v250
      %v279 = vunpack.c.l.b16 %v251
      %v280 = vunpack.c.l.b16 %v252
      %v281 = vpack.c.b16 %v274, %v273
      %v282 = vpack.c.b16 %v276, %v275
      %v283 = vpack.c.b16 %v278, %v277
      %v284 = vpack.c.b16 %v280, %v279
      %v290 = vunpack.c.l.b16 %v253
      %v291 = vunpack.c.l.b16 %v254
      %v292 = vunpack.c.l.b16 %v255
      %v293 = vunpack.c.l.b16 %v256
      %v294 = vunpack.c.l.b16 %v257
      %v295 = vpack.c.b16 %v291, %v290
      %v296 = vpack.c.b16 %v293, %v292
      %v297 = vpack.c.b16 %v294, %v294
      %vm300 = vcmask 293888
      %v302 = vsel %vm300, %v281, 0
      %v305 = vsel %vm300, %v282, 0
      %v308 = vsel %vm300, %v283, 0
      %v311 = vsel %vm300, %v284, 0
      %vm313 = vcmask 1041408
      %v315 = vsel %vm313, %v297, 0
      %317 = vmatprep.subr.bf16.mxu0 0
      %318 = vmatpush1.bf16.msra.mxu0 %v295
      %319 = vmatprep.subr.bf16.mxu0 0
      %320 = vmatpush1.bf16.msra.mxu0 %v296
      %321 = vmatprep.subr.bf16.mxu0 0
      %322 = vmatpush1.bf16.msra.mxu0 %v315
      %323 = vmatprep.subr.bf16.mxu0 0
      %324 = vmatpush1.bf16.msra.mxu0 0
      %325 = vmatprep.subr.bf16.mxu0 0
      %326 = vmatpush1.bf16.msra.mxu0 0
      %327 = vmatprep.subr.bf16.mxu0 0
      %328 = vmatpush1.bf16.msra.mxu0 0
      %329 = vmatprep.subr.bf16.mxu0 0
      %330 = vmatpush1.bf16.msra.mxu0 0
      %331 = vmatprep.subr.bf16.mxu0 0
      %332 = vmatpush1.bf16.msra.mxu0 0
      %333 = vmatprep.subr.bf16.mxu0 0
      %334 = vmatpush1.bf16.msra.mxu0 0
      %335 = vmatprep.subr.bf16.mxu0 0
      %336 = vmatpush1.bf16.msra.mxu0 0
      %337 = vmatprep.subr.bf16.mxu0 0
      %338 = vmatpush1.bf16.msra.mxu0 0
      %339 = vmatprep.subr.bf16.mxu0 0
      %340 = vmatpush1.bf16.msra.mxu0 0
      %341 = vmatprep.subr.bf16.mxu0 0
      %342 = vmatpush1.bf16.msra.mxu0 0
      %343 = vmatprep.subr.bf16.mxu0 0
      %344 = vmatpush1.bf16.msra.mxu0 0
      %345 = vmatprep.subr.bf16.mxu0 0
      %346 = vmatpush1.bf16.msra.mxu0 0
      %347 = vmatprep.subr.bf16.mxu0 0
      %348 = vmatpush1.bf16.msra.mxu0 0
      %349 = vmatprep.mubr.bf16.mxu0 0
      %350 = vmatmul.mubr.bf16.gmra.mrb[0].mxu0 %v302
      %v351 = vpop.f32.mrb[0].mxu0
      %v352 = vadd.f32 %v263, %v351
      %v353 = vpop.f32.mrb[0].mxu0
      %v354 = vpop.f32.mrb[0].mxu0
      %v355 = vadd.f32 %v263, %v354
      %v356 = vpop.f32.mrb[0].mxu0
      %357 = vmatprep.mubr.bf16.mxu0 0
      %358 = vmatmul.mubr.bf16.gmra.mrb[0].mxu0 %v305
      %v359 = vpop.f32.mrb[0].mxu0
      %v360 = vadd.f32 %v263, %v359
      %v361 = vpop.f32.mrb[0].mxu0
      %v362 = vpop.f32.mrb[0].mxu0
      %v363 = vadd.f32 %v263, %v362
      %v364 = vpop.f32.mrb[0].mxu0
      %365 = vmatprep.mubr.bf16.mxu0 0
      %366 = vmatmul.mubr.bf16.gmra.mrb[0].mxu0 %v308
      %v367 = vpop.f32.mrb[0].mxu0
      %v368 = vadd.f32 %v263, %v367
      %v369 = vpop.f32.mrb[0].mxu0
      %v370 = vpop.f32.mrb[0].mxu0
      %v371 = vadd.f32 %v263, %v370
      %v372 = vpop.f32.mrb[0].mxu0
      %373 = vmatprep.mubr.bf16.mxu0 0
      %374 = vmatmul.mubr.bf16.gmra.mrb[0].mxu0 %v311
      %v375 = vpop.f32.mrb[0].mxu0
      %v376 = vadd.f32 %v263, %v375
      %v377 = vpop.f32.mrb[0].mxu0
      %v378 = vpop.f32.mrb[0].mxu0
      %v379 = vadd.f32 %v263, %v378
      %v380 = vpop.f32.mrb[0].mxu0
      %381 = vdwg.mxu0
      %382 = vst [vmem:[%s242] sm:$0xff] %v352
      %383 = vst [vmem:[%s242 + $0x8] sm:$0xff] %v355
      %384 = vst [vmem:[%s242 + $0x10] sm:$0xff] %v360
      %385 = vst [vmem:[%s242 + $0x18] sm:$0xff] %v363
      %386 = vst [vmem:[%s242 + $0x20] sm:$0xff] %v368
      %387 = vst [vmem:[%s242 + $0x28] sm:$0xff] %v371
      %388 = vst [vmem:[%s242 + $0x30] sm:$0xff] %v376
      %389 = vst [vmem:[%s242 + $0x38] sm:$0xff] %v379
      %s390 = smul.u32 8, %s19
      %p391 = scmp.lt.s32.totalorder %s18, 0
      %s392 = scalar_select %p391, %s18, 0
      %p393 = scmp.lt.s32.totalorder %s390, 15
      %s394 = scalar_select %p393, %s390, 15
      %s395 = smul.addr %s392, 16
      %s396 = sadd.s32 %s394, %s395
      %s397 = smul.addr %s396, 8
      %s398 = scalar_lea.vmem %s3, %s397
      // Predicated region
      $region33: #{_conv2d_stride2_forward.1} parent=31 // pred_check
        %p399 = pneg %p126
      $region34: #{_conv2d_stride2_forward.1} parent=31 // pred_check_branch
        %401 = sbr.rel (%p399) target = $region36
      $region35: #{_conv2d_stride2_forward.1} parent=31 // pred_region
        %s402 = smul.u32 8, %s19
      $region36: #{_conv2d_stride2_forward.1} parent=31 // pred_fallthru
        _
    $region32: #{_conv2d_stride2_forward.1} parent=5 // pred_fallthru
      _
    %p403 = scmp.le.s32.totalorder 2, %s9
    // Predicated region
    $region37: #{_conv2d_stride2_forward.1} parent=5 // pred_check
      %p404 = pneg %p403
    $region38: #{_conv2d_stride2_forward.1} parent=5 // pred_check_branch
      %406 = sbr.rel (%p404) target = $region40
    $region39: #{_conv2d_stride2_forward.1} parent=5 // pred_region
      %s407 = ssub.s32 %s9, 2
      // Predicated region
      $region41: #{_conv2d_stride2_forward.1} parent=39 // pred_check
        %p408 = pneg %p132
      $region42: #{_conv2d_stride2_forward.1} parent=39 // pred_check_branch
        %410 = sbr.rel (%p408) target = $region44
      $region43: #{_conv2d_stride2_forward.1} parent=39 // pred_region
        %s411 = smul.u32 8, %s21
        %p412 = scmp.lt.s32.totalorder %s20, 0
        %s413 = scalar_select %p412, %s20, 0
        %p414 = scmp.lt.s32.totalorder %s411, 15
        %s415 = scalar_select %p414, %s411, 15
        %s416 = smul.addr %s413, 16
        %s417 = sadd.s32 %s415, %s416
        %s418 = smul.addr %s417, 8
        %s419 = scalar_lea.vmem %s3, %s418
      $region44: #{_conv2d_stride2_forward.1} parent=39 // pred_fallthru
        _
    $region40: #{_conv2d_stride2_forward.1} parent=5 // pred_fallthru
      _
  $region6: #{_conv2d_stride2_forward.1} parent=0 // loop_footer
    %s13 = sadd.s32 1, %s9
  $region7: #{_conv2d_stride2_forward.1} parent=0 // loop_footer_branch
    %8 = sbr.rel target = $region3
  $region8: #{_conv2d_stride2_forward.1} parent=0 // loop_exit
    _

</llo_original>
